<compile_context>
chip_gen: v5e
topology: v5e:2x2
jax: 0.10.0
libtpu: 0.0.40
codegen_flags: <defaults>
</compile_context>

<pallas_src>
import jax
import jax.numpy as jnp
from jax.experimental import pallas as pl
from jax.experimental.pallas import tpu as pltpu

EMBED_DIM = 128
NODE_DIM = 5
TM_CAP = 4096  # row-tile cap: big enough to amortize grid-step overhead,
               # small enough that the double-buffered working set (~12 MiB
               # worst case incl. fp32 output) fits v5e scoped VMEM comfortably.


def _mlp_kernel(x_ref, w1_ref, b1_ref, w2_ref, b2_ref, o_ref):
    # Layer 1: (tm,5)@(5,128) on the MXU in bf16 (single pass), f32 accumulate.
    x = x_ref[...].astype(jnp.bfloat16)                      # (tm, 5)
    h = jnp.dot(x, w1_ref[...], preferred_element_type=jnp.float32)
    h = jnp.maximum(h + b1_ref[...], 0.0)                    # bias (1,128) + ReLU
    # Layer 2: (tm,128)@(128,128), bf16 operands, f32 accumulate.
    out = jnp.dot(h.astype(jnp.bfloat16), w2_ref[...],
                  preferred_element_type=jnp.float32)
    out = out + b2_ref[...]
    o_ref[...] = out.astype(o_ref.dtype)


def _round_up(x, m):
    return ((x + m - 1) // m) * m


def _choose_tm(M):
    """Row tile: multiple of 8, capped at TM_CAP, and (for large M) >= 4 grid
    steps so the 'parallel' axis can shard across both v7x TensorCores with
    slack.  Pallas masks the ragged last block, so tm need not divide M."""
    return max(8, min(TM_CAP, _round_up(pl.cdiv(M, 4), 8)))


def atsp_init_embedding(locs_mds, w1, b1, w2, b2, *, tm=None,
                        out_dtype=jnp.bfloat16):
    """Pallas equivalent of CustomizeATSPInitEmbedding.forward.

    locs_mds: [batch, num_loc, NODE_DIM] float32
    returns : [batch, num_loc, EMBED_DIM] out_dtype (bf16 default; pass
              out_dtype=jnp.float32 for the original fp32 storage).
    """
    batch, num_loc, node_dim = locs_mds.shape
    assert node_dim == NODE_DIM
    M = batch * num_loc
    x = locs_mds.reshape(M, node_dim)        # metadata-only reshape (no copy)

    if tm is None:
        tm = _choose_tm(M)
    grid = (pl.cdiv(M, tm),)                 # ragged tail handled by Pallas

    # One-time tiny casts/reshapes outside the hot loop; weights stay resident.
    w1_bf = w1.astype(jnp.bfloat16)
    w2_bf = w2.astype(jnp.bfloat16)
    b1_2d = b1.reshape(1, EMBED_DIM).astype(jnp.float32)
    b2_2d = b2.reshape(1, EMBED_DIM).astype(jnp.float32)

    out_bytes = jnp.dtype(out_dtype).itemsize
    cost = pl.CostEstimate(
        flops=2 * M * (NODE_DIM * EMBED_DIM + EMBED_DIM * EMBED_DIM),
        transcendentals=0,
        bytes_accessed=(4 * M * NODE_DIM                      # x (f32)
                        + out_bytes * M * EMBED_DIM           # output
                        + 2 * (NODE_DIM * EMBED_DIM + EMBED_DIM * EMBED_DIM)  # bf16 W
                        + 4 * 2 * EMBED_DIM),                 # f32 biases
    )

    out = pl.pallas_call(
        _mlp_kernel,
        out_shape=jax.ShapeDtypeStruct((M, EMBED_DIM), out_dtype),
        grid_spec=pltpu.PrefetchScalarGridSpec(
            num_scalar_prefetch=0,
            grid=grid,
            in_specs=[
                pl.BlockSpec((tm, NODE_DIM), lambda i: (i, 0)),          # x tile
                pl.BlockSpec((NODE_DIM, EMBED_DIM), lambda i: (0, 0)),   # W1 (resident)
                pl.BlockSpec((1, EMBED_DIM), lambda i: (0, 0)),          # b1 (resident)
                pl.BlockSpec((EMBED_DIM, EMBED_DIM), lambda i: (0, 0)),  # W2 (resident)
                pl.BlockSpec((1, EMBED_DIM), lambda i: (0, 0)),          # b2 (resident)
            ],
            out_specs=pl.BlockSpec((tm, EMBED_DIM), lambda i: (i, 0)),
        ),
        compiler_params=pltpu.CompilerParams(
            dimension_semantics=("parallel",),
            vmem_limit_bytes=32 * 1024 * 1024,   # safe headroom for tm=4096 on v5e
        ),
        cost_estimate=cost,
    )(x, w1_bf, b1_2d, w2_bf, b2_2d)

    return out.reshape(batch, num_loc, EMBED_DIM)


def init_params(key):
    """Deterministic parameter init matching nn.Linear shapes.

    PyTorch Linear stores weight as [out, in]; we keep the math-equivalent
    [in, out] layout so the kernel does x @ W directly.
    """
    k1, k2, k3, k4 = jax.random.split(key, 4)
    lim1 = 1.0 / jnp.sqrt(NODE_DIM)
    lim2 = 1.0 / jnp.sqrt(EMBED_DIM)
    w1 = jax.random.uniform(k1, (NODE_DIM, EMBED_DIM), jnp.float32, -lim1, lim1)
    b1 = jax.random.uniform(k2, (EMBED_DIM,), jnp.float32, -lim1, lim1)
    w2 = jax.random.uniform(k3, (EMBED_DIM, EMBED_DIM), jnp.float32, -lim2, lim2)
    b2 = jax.random.uniform(k4, (EMBED_DIM,), jnp.float32, -lim2, lim2)
    return w1, b1, w2, b2


def reference(locs_mds, w1, b1, w2, b2):
    h = jnp.maximum(locs_mds @ w1 + b1, 0.0)
    return h @ w2 + b2


if __name__ == "__main__":
    key = jax.random.PRNGKey(0)
    kx, kp, kx2 = jax.random.split(key, 3)
    w1, b1, w2, b2 = init_params(kp)

    # bf16 matmul operands / bf16 output => relaxed tolerance vs. fp32 reference.
    ATOL = 2e-2
    RTOL = 2e-2

    # Case 1: small tile-divisible shape (M = 16), default bf16 output.
    batch, num_loc = 2, 8
    locs_mds = jax.random.normal(kx, (batch, num_loc, NODE_DIM), jnp.float32)
    out = jax.block_until_ready(atsp_init_embedding(locs_mds, w1, b1, w2, b2))
    ref = reference(locs_mds, w1, b1, w2, b2)
    assert out.shape == (batch, num_loc, EMBED_DIM), out.shape
    assert out.dtype == jnp.bfloat16, out.dtype
    assert jnp.allclose(out.astype(jnp.float32), ref, atol=ATOL, rtol=RTOL), \
        float(jnp.max(jnp.abs(out.astype(jnp.float32) - ref)))

    # Case 2: ragged shape (M = 21 -> partial last block), fp32 output path.
    batch2, num_loc2 = 3, 7
    locs_mds2 = jax.random.normal(kx2, (batch2, num_loc2, NODE_DIM), jnp.float32)
    out2 = jax.block_until_ready(
        atsp_init_embedding(locs_mds2, w1, b1, w2, b2, out_dtype=jnp.float32))
    ref2 = reference(locs_mds2, w1, b1, w2, b2)
    assert out2.shape == (batch2, num_loc2, EMBED_DIM), out2.shape
    assert out2.dtype == jnp.float32, out2.dtype
    assert jnp.allclose(out2, ref2, atol=ATOL, rtol=RTOL), \
        float(jnp.max(jnp.abs(out2 - ref2)))

    print("KERNEL_OK")
</pallas_src>

<mosaic_0001>
module attributes {stable_mosaic.version = 11 : i64} {
  func.func @_mlp_kernel(%arg0: i32, %arg1: memref<8x5xf32, #tpu.memory_space<vmem>>, %arg2: memref<5x128xbf16, #tpu.memory_space<vmem>>, %arg3: memref<1x128xf32, #tpu.memory_space<vmem>>, %arg4: memref<128x128xbf16, #tpu.memory_space<vmem>>, %arg5: memref<1x128xf32, #tpu.memory_space<vmem>>, %arg6: memref<8x128xbf16, #tpu.memory_space<vmem>>) attributes {dimension_semantics = [#tpu.dimension_semantics<parallel>], iteration_bounds = array<i64: 2>, scalar_prefetch = 0 : i64, scratch_operands = 0 : i64, tpu.core_type = #tpu.core_type<tc>, window_params = [{transform_indices = @transform_0, window_bounds = array<i64: 8, 5>}, {pipeline_mode = #tpu.pipeline_mode<synchronous>, transform_indices = @transform_1, window_bounds = array<i64: 5, 128>}, {pipeline_mode = #tpu.pipeline_mode<synchronous>, transform_indices = @transform_2, window_bounds = array<i64: 1, 128>}, {pipeline_mode = #tpu.pipeline_mode<synchronous>, transform_indices = @transform_3, window_bounds = array<i64: 128, 128>}, {pipeline_mode = #tpu.pipeline_mode<synchronous>, transform_indices = @transform_4, window_bounds = array<i64: 1, 128>}, {transform_indices = @transform_5, window_bounds = array<i64: 8, 128>}]} {
    %c0 = arith.constant 0 : index
    %c0_0 = arith.constant 0 : index
    %0 = vector.load %arg1[%c0, %c0_0] : memref<8x5xf32, #tpu.memory_space<vmem>>, vector<8x5xf32>
    %1 = arith.truncf %0 : vector<8x5xf32> to vector<8x5xbf16>
    %c0_1 = arith.constant 0 : index
    %c0_2 = arith.constant 0 : index
    %2 = vector.load %arg2[%c0_1, %c0_2] : memref<5x128xbf16, #tpu.memory_space<vmem>>, vector<5x128xbf16>
    %cst = arith.constant dense<0.000000e+00> : vector<8x128xf32>
    %3 = tpu.matmul %1, %2, %cst {dimension_numbers = #tpu.dot_dimension_numbers<[1], [0], [0], [1], [0, 0, 1, 1], [], []>} : vector<8x5xbf16>, vector<5x128xbf16>, vector<8x128xf32> -> vector<8x128xf32>
    %c0_3 = arith.constant 0 : index
    %c0_4 = arith.constant 0 : index
    %4 = vector.load %arg3[%c0_3, %c0_4] : memref<1x128xf32, #tpu.memory_space<vmem>>, vector<1x128xf32>
    %5 = vector.broadcast %4 : vector<1x128xf32> to vector<8x128xf32>
    %6 = arith.addf %3, %5 : vector<8x128xf32>
    %cst_5 = arith.constant 0.000000e+00 : f32
    %7 = vector.broadcast %cst_5 : f32 to vector<8x128xf32>
    %8 = arith.maximumf %6, %7 : vector<8x128xf32>
    %9 = arith.truncf %8 : vector<8x128xf32> to vector<8x128xbf16>
    %c0_6 = arith.constant 0 : index
    %c0_7 = arith.constant 0 : index
    %10 = vector.load %arg4[%c0_6, %c0_7] : memref<128x128xbf16, #tpu.memory_space<vmem>>, vector<128x128xbf16>
    %cst_8 = arith.constant dense<0.000000e+00> : vector<8x128xf32>
    %11 = tpu.matmul %9, %10, %cst_8 {dimension_numbers = #tpu.dot_dimension_numbers<[1], [0], [0], [1], [0, 0, 1, 1], [], []>} : vector<8x128xbf16>, vector<128x128xbf16>, vector<8x128xf32> -> vector<8x128xf32>
    %c0_9 = arith.constant 0 : index
    %c0_10 = arith.constant 0 : index
    %12 = vector.load %arg5[%c0_9, %c0_10] : memref<1x128xf32, #tpu.memory_space<vmem>>, vector<1x128xf32>
    %13 = vector.broadcast %12 : vector<1x128xf32> to vector<8x128xf32>
    %14 = arith.addf %11, %13 : vector<8x128xf32>
    %15 = arith.truncf %14 : vector<8x128xf32> to vector<8x128xbf16>
    %c0_11 = arith.constant 0 : index
    %c0_12 = arith.constant 0 : index
    %16 = vector.load %arg6[%c0_11, %c0_12] : memref<8x128xbf16, #tpu.memory_space<vmem>>, vector<8x128xbf16>
    tpu.vector_store %arg6[%c0_11, %c0_12], %15 {strides = array<i32>} : memref<8x128xbf16, #tpu.memory_space<vmem>>, vector<8x128xbf16>,
    return
  }
  func.func @transform_0(%arg0: i32) -> (i32, i32) {
    %c0_i32 = arith.constant 0 : i32
    %c0_i32_0 = arith.constant 0 : i32
    return %arg0, %c0_i32 : i32, i32
  }
  func.func @transform_1(%arg0: i32) -> (i32, i32) {
    %c0_i32 = arith.constant 0 : i32
    %c0_i32_0 = arith.constant 0 : i32
    %c0_i32_1 = arith.constant 0 : i32
    return %c0_i32, %c0_i32_0 : i32, i32
  }
  func.func @transform_2(%arg0: i32) -> (i32, i32) {
    %c0_i32 = arith.constant 0 : i32
    %c0_i32_0 = arith.constant 0 : i32
    %c0_i32_1 = arith.constant 0 : i32
    return %c0_i32, %c0_i32_0 : i32, i32
  }
  func.func @transform_3(%arg0: i32) -> (i32, i32) {
    %c0_i32 = arith.constant 0 : i32
    %c0_i32_0 = arith.constant 0 : i32
    %c0_i32_1 = arith.constant 0 : i32
    return %c0_i32, %c0_i32_0 : i32, i32
  }
  func.func @transform_4(%arg0: i32) -> (i32, i32) {
    %c0_i32 = arith.constant 0 : i32
    %c0_i32_0 = arith.constant 0 : i32
    %c0_i32_1 = arith.constant 0 : i32
    return %c0_i32, %c0_i32_0 : i32, i32
  }
  func.func @transform_5(%arg0: i32) -> (i32, i32) {
    %c0_i32 = arith.constant 0 : i32
    %c0_i32_0 = arith.constant 0 : i32
    return %arg0, %c0_i32 : i32, i32
  }
}

</mosaic_0001>

<llo_original>
// kernel: tpu_custom_call.1
$region0: #{tpu_custom_call.1}
  #allocation0 [shape = 'u32[]', space=smem, size = 0x4, offset = 0x4, fixed_abs, tag = 'smem constant byte address 0x4 - core index']
  #allocation1 [shape = 'u32[72,128]{1,0:T(1,128)}', space=vmem, size = 0x9000, scoped, tag = 'internal scratch']
  %s0 = inlined_call_operand.vmem [shape: f32[16,5], index: 0, kind: input, shape index: {}]
  %s1 = inlined_call_operand.vmem [shape: bf16[5,128], index: 1, kind: input, shape index: {}]
  %s2 = inlined_call_operand.vmem [shape: f32[1,128], index: 2, kind: input, shape index: {}]
  %s3 = inlined_call_operand.hbm [shape: bf16[128,128], index: 3, kind: input, shape index: {}]
  %s4 = inlined_call_operand.vmem [shape: f32[1,128], index: 4, kind: input, shape index: {}]
  %s5 = inlined_call_operand.hbm [shape: bf16[16,128], index: 5, kind: output, shape index: {}]
  %s6 = sld [smem:[#allocation0]]
  $region57: #{tpu_custom_call.1} parent=0
    _
  %s8 = ssub.s32 1, %s6
  %s9 = scalar_select 0, %s8, %s6
  $region1: #{tpu_custom_call.1} parent=0
    #allocation2 [shape = 'u8[32768]{0}', space=vmem, size = 0x8000, scoped, tag = 'input window, operand 3, single buffered']
    #allocation3 [shape = 's32[2]{0}', space=sflag, size = 0x8, scoped, tag = 'scoped memory for tpu_custom_call.1']
    #allocation4 [shape = 's32[2]{0}', space=sflag, size = 0x8, scoped, tag = 'scoped memory for tpu_custom_call.1']
    #allocation5 [shape = 'u8[4096]{0}', space=vmem, size = 0x1000, scoped, tag = 'output window, operand 0']
    %10 = vsyncpa [#allocation3], 0
    %11 = vsyncpa [#allocation4], 0
    %s12 = scalar_lea.sflag [#allocation4], 1
    %13 = vsyncpa %s12, 0
    loop: start=0, step=1, limit=4
    $region2: #{tpu_custom_call.1} parent=1 // loop_pre_header
      _
    $region3: #{tpu_custom_call.1} parent=1 // loop_header
      %s15 = sphi 0, %s19
      %p16 = scmp.ge.s32.totalorder %s15, 4
      %s25 = sphi 0, %s27
      %s28 = sphi 0, %s25
      %s29 = sphi 0, %s28
      %s45 = sphi 0, %s29
      %s49 = sphi 0, %s49
      %s51 = sphi 0, %s49
      %s52 = sphi 0, %s51
      %s66 = sphi 0, %s52
      %s70 = sphi 0, %s70
      %s72 = sphi 0, %s70
      %s73 = sphi 0, %s72
      %s87 = sphi 0, %s73
      %s91 = sphi 0, %s91
      %s93 = sphi 0, %s91
      %s94 = sphi 0, %s93
      %s108 = sphi 0, %s94
      %s112 = sphi 0, %s112
      %s114 = sphi 0, %s112
      %s115 = sphi 0, %s114
      %s129 = sphi 0, %s115
      %s135 = sphi 0, %s137
      %s138 = sphi 0, %s135
      %s139 = sphi 0, %s138
      %s155 = sphi 0, %s139
    $region4: #{tpu_custom_call.1} parent=1 // loop_header_branch
      %18 = sbr.rel (%p16) target = $region8
    $region5: #{tpu_custom_call.1} parent=1 // loop_body
      %s20 = ssub.s32 %s15, 1
      %s21 = ssub.s32 %s15, 2
      %s22 = sadd.s32 %s15, 1
      %s23 = ssub.s32 %s15, %s22
      %p24 = scmp.eq.s32.totalorder %s23, 0
      %s26 = sadd.s32 %s25, 1
      %s27 = scalar_select %p24, %s25, %s26
      %p30 = pneg %p24
      %p31 = scmp.eq.s32.totalorder %s15, 1
      %p32 = por %p30, %p31
      %p33 = scmp.ne.s32.totalorder %s25, %s28
      %p34 = scmp.eq.s32.totalorder %s15, 0
      %p35 = por %p33, %p34
      %p36 = scmp.ne.s32.totalorder %s25, %s28
      %p37 = scmp.eq.s32.totalorder %s20, 1
      %p38 = por %p36, %p37
      %p39 = scmp.ne.s32.totalorder %s28, %s29
      %p40 = scmp.eq.s32.totalorder %s20, 0
      %p41 = por %p39, %p40
      %p42 = scmp.ne.s32.totalorder %s28, %s29
      %p43 = scmp.eq.s32.totalorder %s21, 1
      %p44 = por %p42, %p43
      %p46 = scmp.ne.s32.totalorder %s29, %s45
      %p47 = scmp.eq.s32.totalorder %s21, 0
      %p48 = por %p46, %p47
      %s50 = sadd.s32 %s49, 1
      %p53 = scmp.eq.s32.totalorder %s15, 1
      %p54 = scmp.ne.s32.totalorder %s49, %s51
      %p55 = scmp.eq.s32.totalorder %s15, 0
      %p56 = por %p54, %p55
      %p57 = scmp.ne.s32.totalorder %s49, %s51
      %p58 = scmp.eq.s32.totalorder %s20, 1
      %p59 = por %p57, %p58
      %p60 = scmp.ne.s32.totalorder %s51, %s52
      %p61 = scmp.eq.s32.totalorder %s20, 0
      %p62 = por %p60, %p61
      %p63 = scmp.ne.s32.totalorder %s51, %s52
      %p64 = scmp.eq.s32.totalorder %s21, 1
      %p65 = por %p63, %p64
      %p67 = scmp.ne.s32.totalorder %s52, %s66
      %p68 = scmp.eq.s32.totalorder %s21, 0
      %p69 = por %p67, %p68
      %s71 = sadd.s32 %s70, 1
      %p74 = scmp.eq.s32.totalorder %s15, 1
      %p75 = scmp.ne.s32.totalorder %s70, %s72
      %p76 = scmp.eq.s32.totalorder %s15, 0
      %p77 = por %p75, %p76
      %p78 = scmp.ne.s32.totalorder %s70, %s72
      %p79 = scmp.eq.s32.totalorder %s20, 1
      %p80 = por %p78, %p79
      %p81 = scmp.ne.s32.totalorder %s72, %s73
      %p82 = scmp.eq.s32.totalorder %s20, 0
      %p83 = por %p81, %p82
      %p84 = scmp.ne.s32.totalorder %s72, %s73
      %p85 = scmp.eq.s32.totalorder %s21, 1
      %p86 = por %p84, %p85
      %p88 = scmp.ne.s32.totalorder %s73, %s87
      %p89 = scmp.eq.s32.totalorder %s21, 0
      %p90 = por %p88, %p89
      %s92 = sadd.s32 %s91, 1
      %p95 = scmp.eq.s32.totalorder %s15, 1
      %p96 = scmp.ne.s32.totalorder %s91, %s93
      %p97 = scmp.eq.s32.totalorder %s15, 0
      %p98 = por %p96, %p97
      %p99 = scmp.ne.s32.totalorder %s91, %s93
      %p100 = scmp.eq.s32.totalorder %s20, 1
      %p101 = por %p99, %p100
      %p102 = scmp.ne.s32.totalorder %s93, %s94
      %p103 = scmp.eq.s32.totalorder %s20, 0
      %p104 = por %p102, %p103
      %p105 = scmp.ne.s32.totalorder %s93, %s94
      %p106 = scmp.eq.s32.totalorder %s21, 1
      %p107 = por %p105, %p106
      %p109 = scmp.ne.s32.totalorder %s94, %s108
      %p110 = scmp.eq.s32.totalorder %s21, 0
      %p111 = por %p109, %p110
      %s113 = sadd.s32 %s112, 1
      %p116 = scmp.eq.s32.totalorder %s15, 1
      %p117 = scmp.ne.s32.totalorder %s112, %s114
      %p118 = scmp.eq.s32.totalorder %s15, 0
      %p119 = por %p117, %p118
      %p120 = scmp.ne.s32.totalorder %s112, %s114
      %p121 = scmp.eq.s32.totalorder %s20, 1
      %p122 = por %p120, %p121
      %p123 = scmp.ne.s32.totalorder %s114, %s115
      %p124 = scmp.eq.s32.totalorder %s20, 0
      %p125 = por %p123, %p124
      %p126 = scmp.ne.s32.totalorder %s114, %s115
      %p127 = scmp.eq.s32.totalorder %s21, 1
      %p128 = por %p126, %p127
      %p130 = scmp.ne.s32.totalorder %s115, %s129
      %p131 = scmp.eq.s32.totalorder %s21, 0
      %p132 = por %p130, %p131
      %s133 = ssub.s32 %s15, %s22
      %p134 = scmp.eq.s32.totalorder %s133, 0
      %s136 = sadd.s32 %s135, 1
      %s137 = scalar_select %p134, %s135, %s136
      %p140 = pneg %p134
      %p141 = scmp.eq.s32.totalorder %s15, 1
      %p142 = por %p140, %p141
      %p143 = scmp.ne.s32.totalorder %s135, %s138
      %p144 = scmp.eq.s32.totalorder %s15, 0
      %p145 = por %p143, %p144
      %p146 = scmp.ne.s32.totalorder %s135, %s138
      %p147 = scmp.eq.s32.totalorder %s20, 1
      %p148 = por %p146, %p147
      %p149 = scmp.ne.s32.totalorder %s138, %s139
      %p150 = scmp.eq.s32.totalorder %s20, 0
      %p151 = por %p149, %p150
      %p152 = scmp.ne.s32.totalorder %s138, %s139
      %p153 = scmp.eq.s32.totalorder %s21, 1
      %p154 = por %p152, %p153
      %p156 = scmp.ne.s32.totalorder %s139, %s155
      %p157 = scmp.eq.s32.totalorder %s21, 0
      %p158 = por %p156, %p157
      %p159 = scmp.le.s32.totalorder 1, %s15
      %p160 = scmp.lt.s32.totalorder %s15, 3
      %p161 = pnand %p159, %p160
      %p162 = pneg %p161
      // Predicated region
      $region9: #{tpu_custom_call.1} parent=5 // pred_check
        _
      $region10: #{tpu_custom_call.1} parent=5 // pred_check_branch
        %164 = sbr.rel (%p161) target = $region12
      $region11: #{tpu_custom_call.1} parent=5 // pred_region
        %s165 = ssub.s32 %s15, 1
        // Predicated region
        $region13: #{tpu_custom_call.1} parent=11 // pred_check
          %p166 = pneg %p62
        $region14: #{tpu_custom_call.1} parent=11 // pred_check_branch
          %168 = sbr.rel (%p166) target = $region16
        $region15: #{tpu_custom_call.1} parent=11 // pred_region
          _
        $region16: #{tpu_custom_call.1} parent=11 // pred_fallthru
          _
        // Predicated region
        $region17: #{tpu_custom_call.1} parent=11 // pred_check
          %p169 = pneg %p83
        $region18: #{tpu_custom_call.1} parent=11 // pred_check_branch
          %171 = sbr.rel (%p169) target = $region20
        $region19: #{tpu_custom_call.1} parent=11 // pred_region
          _
        $region20: #{tpu_custom_call.1} parent=11 // pred_fallthru
          _
        // Predicated region
        $region21: #{tpu_custom_call.1} parent=11 // pred_check
          %p172 = pneg %p104
        $region22: #{tpu_custom_call.1} parent=11 // pred_check_branch
          %174 = sbr.rel (%p172) target = $region24
        $region23: #{tpu_custom_call.1} parent=11 // pred_region
          %176 = vsyncadd [#allocation3], 0
          %s177 = sshll.u32 %s3, 4
          %s178 = int_to_ptr.hbm [resolvable:$true] %s177
          %s179 = sshll.u32 [#allocation2], 4
          %s180 = int_to_ptr.vmem [resolvable:$true] %s179
          %185 = dma.hbm_to_vmem [thread:$0]  %s178, 1024, %s180, [#allocation3], 64, 64, 4
        $region24: #{tpu_custom_call.1} parent=11 // pred_fallthru
          _
        // Predicated region
        $region25: #{tpu_custom_call.1} parent=11 // pred_check
          %p186 = pneg %p125
        $region26: #{tpu_custom_call.1} parent=11 // pred_check_branch
          %188 = sbr.rel (%p186) target = $region28
        $region27: #{tpu_custom_call.1} parent=11 // pred_region
          _
        $region28: #{tpu_custom_call.1} parent=11 // pred_fallthru
          _
      $region12: #{tpu_custom_call.1} parent=5 // pred_fallthru
        _
      %p189 = scmp.lt.s32.totalorder %s15, 2
      // Predicated region
      $region29: #{tpu_custom_call.1} parent=5 // pred_check
        %p190 = pneg %p189
      $region30: #{tpu_custom_call.1} parent=5 // pred_check_branch
        %192 = sbr.rel (%p190) target = $region32
      $region31: #{tpu_custom_call.1} parent=5 // pred_region
        // Predicated region
        $region33: #{tpu_custom_call.1} parent=31 // pred_check
          %p193 = pneg %p35
        $region34: #{tpu_custom_call.1} parent=31 // pred_check_branch
          %195 = sbr.rel (%p193) target = $region36
        $region35: #{tpu_custom_call.1} parent=31 // pred_region
          %p196 = scmp.lt.s32.totalorder %s15, 1
          %s197 = scalar_select %p196, %s15, 1
          %s198 = smul.addr %s197, 8
          %s199 = scalar_lea.vmem %s0, %s198
        $region36: #{tpu_custom_call.1} parent=31 // pred_fallthru
          _
      $region32: #{tpu_custom_call.1} parent=5 // pred_fallthru
        _
      %p200 = scmp.le.s32.totalorder 1, %s15
      %p201 = scmp.lt.s32.totalorder %s15, 3
      %p202 = pnand %p200, %p201
      %p203 = pneg %p202
      // Predicated region
      $region37: #{tpu_custom_call.1} parent=5 // pred_check
        _
      $region38: #{tpu_custom_call.1} parent=5 // pred_check_branch
        %205 = sbr.rel (%p202) target = $region40
      $region39: #{tpu_custom_call.1} parent=5 // pred_region
        %s206 = ssub.s32 %s15, 1
        // Predicated region
        $region41: #{tpu_custom_call.1} parent=39 // pred_check
          %p207 = pneg %p104
        $region42: #{tpu_custom_call.1} parent=39 // pred_check_branch
          %209 = sbr.rel (%p207) target = $region44
        $region43: #{tpu_custom_call.1} parent=39 // pred_region
          %211 = dma.done [#allocation3], 1024
        $region44: #{tpu_custom_call.1} parent=39 // pred_fallthru
          _
        %p212 = scmp.lt.s32.totalorder %s20, 1
        %s213 = scalar_select %p212, %s20, 1
        %s214 = smul.addr %s213, 8
        %s215 = scalar_lea.vmem %s0, %s214
        %p216 = pneg %p41
        %p217 = pneg %p38
        %p218 = pneg %p62
        %p219 = pneg %p59
        %p220 = pneg %p83
        %p221 = pneg %p80
        %p222 = pneg %p104
        %p223 = pneg %p101
        %p224 = pneg %p125
        %p225 = pneg %p122
        %p226 = pneg %p151
        %p227 = pneg %p148
        %s228 = sand.u32 %s138, 1
        %s229 = scalar_lea.sflag [#allocation4], %s228
        %s230 = sand.u32 %s138, 1
        %s231 = smul.addr %s230, 4
        %s232 = scalar_lea.vmem [#allocation5], %s231
        %p233 = scmp.lt.s32.totalorder %s20, 1
        %s234 = scalar_select %p233, %s20, 1
        %s235 = smul.addr %s234, 8
        %s236 = scalar_lea.vmem %s0, %s235
        %v238 = vld [vmem:[%s236] sm:$0xff]
        %v239 = vpack.c.bf16 %v238, %v238
        %v240 = vld [vmem:[%s1] sm:$0x7]
        %v241 = vld [vmem:[%s2] sm:$0x1]
        %v243 = vperm.slane %v241, 0
        %vm245 = vcmask 39936
        %v247 = vsel %vm245, %v239, 0
        %vm249 = vcmask 1041408
        %vm250 = vcmask 1042432
        %v251 = vsel %vm249, 4294967295, 65535
        %v252 = vsel %vm250, %v251, 0
        %v254 = vand.u32 %v240, %v252
        %256 = vmatpush.bf16.msra.mxu0 0
        %257 = vmatpush.bf16.msra.mxu0 0
        %258 = vmatpush.bf16.msra.mxu0 0
        %259 = vmatpush.bf16.msra.mxu0 0
        %260 = vmatpush.bf16.msra.mxu0 0
        %261 = vmatpush.bf16.msra.mxu0 0
        %262 = vmatpush.bf16.msra.mxu0 0
        %263 = vmatpush.bf16.msra.mxu0 %v254
        %264 = vmatmul.bf16.gmra.mxu0 %v247
        %v265 = vpop.f32.mrf.mxu0
        %v266 = vadd.f32 %v243, %v265
        %v267 = vpop.f32.mrf.mxu0
        %268 = vdwg.mxu0
        %v269 = vmax.f32 %v266, 0.0
        %v270 = vpack.c.bf16 %v269, %v269
        %v271 = vld [vmem:[#allocation2] sm:$0xf]
        %v272 = vld [vmem:[#allocation2 + $0x4] sm:$0xf]
        %v273 = vld [vmem:[#allocation2 + $0x8] sm:$0xf]
        %v274 = vld [vmem:[#allocation2 + $0xc] sm:$0xf]
        %v275 = vld [vmem:[#allocation2 + $0x10] sm:$0xf]
        %v276 = vld [vmem:[#allocation2 + $0x14] sm:$0xf]
        %v277 = vld [vmem:[#allocation2 + $0x18] sm:$0xf]
        %v278 = vld [vmem:[#allocation2 + $0x1c] sm:$0xf]
        %v279 = vld [vmem:[#allocation2 + $0x20] sm:$0xf]
        %v280 = vld [vmem:[#allocation2 + $0x24] sm:$0xf]
        %v281 = vld [vmem:[#allocation2 + $0x28] sm:$0xf]
        %v282 = vld [vmem:[#allocation2 + $0x2c] sm:$0xf]
        %v283 = vld [vmem:[#allocation2 + $0x30] sm:$0xf]
        %v284 = vld [vmem:[#allocation2 + $0x34] sm:$0xf]
        %v285 = vld [vmem:[#allocation2 + $0x38] sm:$0xf]
        %v286 = vld [vmem:[#allocation2 + $0x3c] sm:$0xf]
        %v287 = vld [vmem:[%s4] sm:$0x1]
        %v289 = vperm.slane %v287, 0
        %v307 = vunpack.c.l.b16 %v271
        %v308 = vunpack.c.l.b16 %v272
        %v309 = vunpack.c.l.b16 %v273
        %v310 = vunpack.c.l.b16 %v274
        %v311 = vunpack.c.l.b16 %v275
        %v312 = vunpack.c.l.b16 %v276
        %v313 = vunpack.c.l.b16 %v277
        %v314 = vunpack.c.l.b16 %v278
        %v315 = vunpack.c.l.b16 %v279
        %v316 = vunpack.c.l.b16 %v280
        %v317 = vunpack.c.l.b16 %v281
        %v318 = vunpack.c.l.b16 %v282
        %v319 = vunpack.c.l.b16 %v283
        %v320 = vunpack.c.l.b16 %v284
        %v321 = vunpack.c.l.b16 %v285
        %v322 = vunpack.c.l.b16 %v286
        %v323 = vpack.c.b16 %v308, %v307
        %v324 = vpack.c.b16 %v310, %v309
        %v325 = vpack.c.b16 %v312, %v311
        %v326 = vpack.c.b16 %v314, %v313
        %v327 = vpack.c.b16 %v316, %v315
        %v328 = vpack.c.b16 %v318, %v317
        %v329 = vpack.c.b16 %v320, %v319
        %v330 = vpack.c.b16 %v322, %v321
        %339 = vmatpush.bf16.msra.mxu0 %v330
        %340 = vmatpush.bf16.msra.mxu0 %v329
        %341 = vmatpush.bf16.msra.mxu0 %v328
        %342 = vmatpush.bf16.msra.mxu0 %v327
        %343 = vmatpush.bf16.msra.mxu0 %v326
        %344 = vmatpush.bf16.msra.mxu0 %v325
        %345 = vmatpush.bf16.msra.mxu0 %v324
        %346 = vmatpush.bf16.msra.mxu0 %v323
        %347 = vmatmul.bf16.gmra.mxu0 %v270
        %v348 = vpop.f32.mrf.mxu0
        %v349 = vadd.f32 %v289, %v348
        %v350 = vpop.f32.mrf.mxu0
        %351 = vdwg.mxu0
        %v352 = vpack.c.bf16 %v349, %v349
        %353 = vst [vmem:[%s232] sm:$0xf] %v352
        %s354 = sand.u32 %s138, 1
        %s355 = scalar_lea.sflag [#allocation4], %s354
        %s356 = sand.u32 %s138, 1
        %s357 = smul.addr %s356, 4
        %s358 = scalar_lea.vmem [#allocation5], %s357
        // Predicated region
        $region45: #{tpu_custom_call.1} parent=39 // pred_check
          %p359 = pneg %p148
        $region46: #{tpu_custom_call.1} parent=39 // pred_check_branch
          %361 = sbr.rel (%p359) target = $region48
        $region47: #{tpu_custom_call.1} parent=39 // pred_region
          %363 = vsyncadd %s355, 0
          %s364 = smul.addr %s20, 4
          %s365 = scalar_lea.hbm %s5, %s364
          %s367 = sshll.u32 %s358, 4
          %s368 = int_to_ptr.vmem [resolvable:$true] %s367
          %s369 = sshll.u32 %s365, 4
          %s370 = int_to_ptr.hbm [resolvable:$true] %s369
          %372 = dma.vmem_to_hbm [thread:$0]  %s368, 64, %s370, %s355
        $region48: #{tpu_custom_call.1} parent=39 // pred_fallthru
          _
      $region40: #{tpu_custom_call.1} parent=5 // pred_fallthru
        _
      %p373 = scmp.le.s32.totalorder 2, %s15
      // Predicated region
      $region49: #{tpu_custom_call.1} parent=5 // pred_check
        %p374 = pneg %p373
      $region50: #{tpu_custom_call.1} parent=5 // pred_check_branch
        %376 = sbr.rel (%p374) target = $region52
      $region51: #{tpu_custom_call.1} parent=5 // pred_region
        %s377 = ssub.s32 %s15, 2
        // Predicated region
        $region53: #{tpu_custom_call.1} parent=51 // pred_check
          %p378 = pneg %p154
        $region54: #{tpu_custom_call.1} parent=51 // pred_check_branch
          %380 = sbr.rel (%p378) target = $region56
        $region55: #{tpu_custom_call.1} parent=51 // pred_region
          %s381 = sand.u32 %s139, 1
          %s382 = scalar_lea.sflag [#allocation4], %s381
          %s383 = sand.u32 %s139, 1
          %s384 = smul.addr %s383, 4
          %s385 = scalar_lea.vmem [#allocation5], %s384
          %387 = dma.done %s382, 64
        $region56: #{tpu_custom_call.1} parent=51 // pred_fallthru
          _
      $region52: #{tpu_custom_call.1} parent=5 // pred_fallthru
        _
    $region6: #{tpu_custom_call.1} parent=1 // loop_footer
      %s19 = sadd.s32 1, %s15
    $region7: #{tpu_custom_call.1} parent=1 // loop_footer_branch
      %14 = sbr.rel target = $region3
    $region8: #{tpu_custom_call.1} parent=1 // loop_exit
      _
    %388 = vsyncpa [#allocation3], 1
    %s389 = scalar_lea.sflag [#allocation3], 1
    %390 = vsyncpa %s389, 1
    %391 = vsyncpa [#allocation4], 1
    %s392 = scalar_lea.sflag [#allocation4], 1
    %393 = vsyncpa %s392, 1

</llo_original>
